<compile_context>
chip_gen: v5e
topology: v5e:2x2
jax: 0.10.0
libtpu: 0.0.40
codegen_flags: <defaults>
</compile_context>

<pallas_src>
import functools

import jax
import jax.numpy as jnp
import numpy as np
from jax.experimental import pallas as pl
from jax.experimental.pallas import tpu as pltpu

EPS = 1e-5
IN_CH = 8        # BatchNorm1d(8) fixes the input channel count
HIDDEN = 16
OUT_CH = 2       # args.flow == False

_MAX_UNROLLED_CHUNKS = 8


def _pad128(n):
    return -(-n // 128) * 128


def _vmem_capacity():
    try:
        return int(pltpu.get_tpu_info().vmem_capacity_bytes)
    except Exception:
        return 64 << 20      # conservative: v7x has the smallest VMEM (64 MiB / TC)


# ---------------------------------------------------------------------------
# Kernel 1: global spatial max-pool, grid = (batch tiles, HW tiles).
# ---------------------------------------------------------------------------
def pool_kernel(x_ref, pooled_ref, *, lane_dense):
    """Max over one (tn, C, thw) block, max-accumulated over the HW grid axis.

    Perf notes:
      * 128-lane chunks are read straight from the VMEM ref (no full-tile
        value load -> no vreg spill at large tiles), folded with VPU maximums,
        then one XLU cross-lane reduce per vreg row;
      * HW % 128 tails are folded separately (full chunks stay aligned);
      * many chunks -> lax.fori_loop(unroll=4) keeps the trace small while the
        LLO scheduler still sees independent vld/vmax per iteration;
      * result stored lane-dense as (C, tn) (one small XLU transpose) so the
        stores are unmasked vst when tn is a multiple of 128 (or tn == N).
    """
    hw_idx = pl.program_id(1)
    thw = x_ref.shape[-1]
    n_full, tail = divmod(thw, 128)

    if n_full >= 1:
        acc = x_ref[:, :, 0:128]                                  # (tn, C, 128)
        if n_full <= _MAX_UNROLLED_CHUNKS:
            for c in range(1, n_full):
                acc = jnp.maximum(acc, x_ref[:, :, c * 128:(c + 1) * 128])
        else:
            def body(c, a):
                start = pl.multiple_of(c * 128, 128)
                return jnp.maximum(a, x_ref[:, :, pl.ds(start, 128)])
            acc = jax.lax.fori_loop(1, n_full, body, acc, unroll=4)
        tile_max = jnp.max(acc, axis=-1)                          # (tn, C)
        if tail:
            tile_max = jnp.maximum(
                tile_max, jnp.max(x_ref[:, :, n_full * 128:thw], axis=-1))
    else:
        tile_max = jnp.max(x_ref[...], axis=-1)                   # (tn, C)

    result = (tile_max.T if lane_dense else tile_max).astype(pooled_ref.dtype)

    @pl.when(hw_idx == 0)
    def _():
        pooled_ref[...] = result

    @pl.when(hw_idx > 0)
    def _():
        pooled_ref[...] = jnp.maximum(pooled_ref[...], result)


# ---------------------------------------------------------------------------
# Kernel 2: BN(8) -> sigmoid -> Linear(8,16) -> BN(16) -> sigmoid -> Linear(16,2)
# Channels on sublanes, batch on lanes: pooled (8, N), hidden (16, N),
# weights kept in PyTorch (out, in) layout, BN stats = lane reductions.
# ---------------------------------------------------------------------------
def mlp_bn_kernel(pooled_ref, vecs_ref, w1_ref, w2_ref, o_ref):
    x = pooled_ref[...].astype(jnp.float32)          # (8, N)
    n = x.shape[-1]
    inv_n = 1.0 / n

    g1 = vecs_ref[0:IN_CH, 0:1]                      # (8, 1)
    b1 = vecs_ref[0:IN_CH, 1:2]
    c1 = vecs_ref[:, 2:3]                            # (16, 1)
    g2 = vecs_ref[:, 3:4]
    b2 = vecs_ref[:, 4:5]
    c2 = vecs_ref[0:OUT_CH, 5:6]                     # (2, 1)

    # BatchNorm1d(8), training mode: batch statistics, biased variance.
    m1 = jnp.sum(x, axis=-1, keepdims=True) * inv_n
    xc = x - m1
    v1 = jnp.sum(xc * xc, axis=-1, keepdims=True) * inv_n
    h = xc * jax.lax.rsqrt(v1 + EPS) * g1 + b1
    h = jax.nn.sigmoid(h)

    # Linear(8, 16): (16, 8) @ (8, N)  (tiny; MXU utilization irrelevant here)
    h = jnp.dot(w1_ref[...], h, preferred_element_type=jnp.float32) + c1

    # BatchNorm1d(16), training mode.
    m2 = jnp.sum(h, axis=-1, keepdims=True) * inv_n
    hc = h - m2
    v2 = jnp.sum(hc * hc, axis=-1, keepdims=True) * inv_n
    h = hc * jax.lax.rsqrt(v2 + EPS) * g2 + b2
    h = jax.nn.sigmoid(h)

    # Linear(16, OUT_CH): (2, 16) @ (16, N)
    out = jnp.dot(w2_ref[...], h, preferred_element_type=jnp.float32) + c2
    o_ref[...] = out.astype(o_ref.dtype)


# ---------------------------------------------------------------------------
# Tile selection (byte-budget driven, lane padding + per-generation VMEM aware)
# ---------------------------------------------------------------------------
def _choose_tiles(N, C, HW, itemsize=4):
    """Pick (tn, thw) for the pooling kernel.

    Legality (Mosaic (8,128) block rules):
      * input block (tn, C, thw):  thw % 128 == 0 or thw == HW
      * lane-dense output (C, tn): tn % 128 == 0 or tn == N
        (otherwise fall back to a masked (tn, C) output, tn % 8 == 0)
    Targets:
      * ~2 MiB per input buffer (>=1 MiB ~ 85% of HBM roofline), never more
        than ~1/8 of physical VMEM (v7x = 64 MiB) once double-buffered
      * grid of >= 4 steps when shapes allow (pipelining + v7x megacore)
    """
    target = 2 << 20
    cap = max(2 << 20, _vmem_capacity() // 8)

    def blk(tn, thw):
        return tn * C * _pad128(thw) * itemsize

    thw_cands = sorted({t for t in range(128, HW + 1, 128) if HW % t == 0} | {HW})
    tn_dense = sorted({t for t in range(128, N + 1, 128) if N % t == 0} | {N})
    tn_any = sorted({t for t in range(8, N + 1, 8) if N % t == 0} | {N})

    # Lane-dense batch tiles if even the smallest fits the hard cap; otherwise
    # fall back to any multiple-of-8 divisor (masked stores but fits VMEM).
    tn_cands = tn_dense if blk(tn_dense[0], thw_cands[0]) <= cap else tn_any

    # HW tile: largest candidate that keeps a minimal batch tile under target.
    thw = thw_cands[0]
    for t in thw_cands:
        if blk(tn_cands[0], t) <= target:
            thw = t

    # Batch tile: largest candidate under target.
    tn = tn_cands[0]
    for t in tn_cands:
        if blk(t, thw) <= target:
            tn = t

    # Keep >= 4 grid steps when shapes allow (prefer splitting the batch axis,
    # which is the "parallel"/megacore axis).
    while (N // tn) * (HW // thw) < 4:
        tn_smaller = [t for t in tn_cands if t < tn]
        thw_smaller = [t for t in thw_cands if t < thw]
        if tn_smaller and (N // tn) < 4:
            tn = tn_smaller[-1]
        elif thw_smaller:
            thw = thw_smaller[-1]
        else:
            break
    return tn, thw


def _pack_param_vecs(p):
    """Pack g1,b1,c1,g2,b2,c2 as columns of one (HIDDEN, 6) array (channels on
    sublanes -> (C, 1) slices need no in-kernel transpose)."""
    cols = []
    for name in ("g1", "b1", "c1", "g2", "b2", "c2"):
        v = jnp.asarray(p[name], jnp.float32).reshape(-1)
        cols.append(jnp.pad(v, (0, HIDDEN - v.shape[0])))
    return jnp.stack(cols, axis=1)                   # (HIDDEN, 6)


# ---------------------------------------------------------------------------
# Wrapper
# ---------------------------------------------------------------------------
def voter_forward(x_nchw, params, tile_n=None, tile_hw=None):
    """x_nchw: (N, 8, H, W). Returns (N, OUT_CH) float32 (training-mode BN)."""
    N, C, H, W = x_nchw.shape
    assert C == IN_CH, f"VoterModule expects {IN_CH} input channels"
    HW = H * W
    x = x_nchw.reshape(N, C, HW)                     # metadata-only reshape; HW on lanes
    itemsize = x.dtype.itemsize

    auto_tn, auto_thw = _choose_tiles(N, C, HW, itemsize)
    tn = auto_tn if tile_n is None else tile_n
    thw = auto_thw if tile_hw is None else tile_hw
    assert N % tn == 0 and HW % thw == 0, "tiles must divide the array dims"
    assert thw == HW or thw % 128 == 0, "HW tile must be a multiple of 128 (or full HW)"
    assert tn == N or tn % 8 == 0, "batch tile must be a multiple of 8 (or == N)"

    # Lane-dense (C, N) pooled layout (unmasked stores) whenever legal; masked
    # (N, C) layout + tiny wrapper transpose only for ragged large N.
    lane_dense = (tn == N) or (tn % 128 == 0)
    if lane_dense:
        pooled_shape = (C, N)
        out_spec = pl.BlockSpec((C, tn), lambda i, j: (0, i))
    else:
        pooled_shape = (N, C)
        out_spec = pl.BlockSpec((tn, C), lambda i, j: (i, 0))

    # VMEM budget: double-buffered input + output blocks (lane padding
    # included) + headroom for Mosaic internal scratch, clamped to physical VMEM.
    x_blk = tn * C * _pad128(thw) * itemsize
    out_blk = max(C * _pad128(tn), tn * 128) * 4
    vmem_limit = int(min(_vmem_capacity(),
                         max(32 << 20, 2 * x_blk + 2 * out_blk + (4 << 20))))

    pooled = pl.pallas_call(
        functools.partial(pool_kernel, lane_dense=lane_dense),
        out_shape=jax.ShapeDtypeStruct(pooled_shape, jnp.float32),
        grid=(N // tn, HW // thw),
        in_specs=[pl.BlockSpec((tn, C, thw), lambda i, j: (i, 0, j))],
        out_specs=out_spec,
        compiler_params=pltpu.CompilerParams(
            dimension_semantics=("parallel", "arbitrary"),
            vmem_limit_bytes=vmem_limit),
    )(x)
    if not lane_dense:
        pooled = pooled.T                            # tiny (N, 8) -> (8, N)

    # Kernel 2: grid-less epilogue on the (8, N) pooled array (whole arrays in
    # VMEM; ~32 bytes/batch element, so fine up to very large N).
    # TODO(synk): for N in the millions, tile this with a two-pass BN instead.
    vecs = _pack_param_vecs(params)
    vmem = pl.BlockSpec(memory_space=pltpu.MemorySpace.VMEM)
    out_cn = pl.pallas_call(
        mlp_bn_kernel,
        out_shape=jax.ShapeDtypeStruct((OUT_CH, N), jnp.float32),
        in_specs=[vmem, vmem, vmem, vmem],
        out_specs=vmem,
    )(pooled, vecs, params["w1"], params["w2"])
    return out_cn.T                                  # (N, OUT_CH), matches PyTorch


# ---------------------------------------------------------------------------
# Params + pure-JAX reference
# ---------------------------------------------------------------------------
def make_params(key):
    k1, k2, k3, k4, k5, k6, k7, k8 = jax.random.split(key, 8)
    return dict(
        # BN affine params (PyTorch init is weight=1, bias=0; perturbed here so
        # the test actually exercises the affine path).
        g1=1.0 + 0.1 * jax.random.normal(k5, (IN_CH,), jnp.float32),
        b1=0.1 * jax.random.normal(k6, (IN_CH,), jnp.float32),
        g2=1.0 + 0.1 * jax.random.normal(k7, (HIDDEN,), jnp.float32),
        b2=0.1 * jax.random.normal(k8, (HIDDEN,), jnp.float32),
        # Linear weights in PyTorch (out_features, in_features) layout.
        w1=jax.random.normal(k1, (HIDDEN, IN_CH), jnp.float32) * 0.1,
        c1=jax.random.normal(k2, (HIDDEN,), jnp.float32) * 0.1,
        w2=jax.random.normal(k3, (OUT_CH, HIDDEN), jnp.float32) * 0.1,
        c2=jax.random.normal(k4, (OUT_CH,), jnp.float32) * 0.1,
    )


def reference_forward(x_nchw, p):
    """Pure-JAX reference mirroring the PyTorch forward (training-mode BN)."""
    N, C, H, W = x_nchw.shape
    pooled = jnp.max(x_nchw.reshape(N, C, H * W), axis=-1)        # (N, 8)
    m1 = jnp.mean(pooled, axis=0, keepdims=True)
    v1 = jnp.mean((pooled - m1) ** 2, axis=0, keepdims=True)
    h = (pooled - m1) * jax.lax.rsqrt(v1 + EPS) * p["g1"] + p["b1"]
    h = jax.nn.sigmoid(h)
    h = h @ p["w1"].T + p["c1"]
    m2 = jnp.mean(h, axis=0, keepdims=True)
    v2 = jnp.mean((h - m2) ** 2, axis=0, keepdims=True)
    h = (h - m2) * jax.lax.rsqrt(v2 + EPS) * p["g2"] + p["b2"]
    h = jax.nn.sigmoid(h)
    return h @ p["w2"].T + p["c2"]


if __name__ == "__main__":
    key = jax.random.PRNGKey(0)
    kx1, kx2, kp = jax.random.split(key, 3)
    params = make_params(kp)

    # Config A: (16, 8, 16, 16) -> auto tiles pick thw=128, exercising the
    # HW-reduction grid axis + resident max-accumulator.
    x1 = jax.random.normal(kx1, (16, IN_CH, 16, 16), jnp.float32)
    out_a = jax.block_until_ready(voter_forward(x1, params))
    np.testing.assert_allclose(np.asarray(out_a),
                               np.asarray(reference_forward(x1, params)),
                               rtol=1e-5, atol=1e-5)

    # Config B: explicit full-HW tile -> exercises the multi-chunk VPU fold.
    out_b = jax.block_until_ready(voter_forward(x1, params, tile_n=16, tile_hw=256))
    np.testing.assert_allclose(np.asarray(out_b),
                               np.asarray(reference_forward(x1, params)),
                               rtol=1e-5, atol=1e-5)

    # Config C: HW = 14*14 = 196 (not a multiple of 128) -> exercises the
    # aligned-chunk + tail fold path.
    x2 = jax.random.normal(kx2, (8, IN_CH, 14, 14), jnp.float32)
    out_c = jax.block_until_ready(voter_forward(x2, params))
    np.testing.assert_allclose(np.asarray(out_c),
                               np.asarray(reference_forward(x2, params)),
                               rtol=1e-5, atol=1e-5)

    print("KERNEL_OK")
</pallas_src>

<mosaic_0001>
module attributes {stable_mosaic.version = 11 : i64} {
  func.func @pool_kernel(%arg0: i32, %arg1: i32, %arg2: memref<16x8x128xf32, #tpu.memory_space<vmem>>, %arg3: memref<8x16xf32, #tpu.memory_space<vmem>>) attributes {dimension_semantics = [#tpu.dimension_semantics<parallel>, #tpu.dimension_semantics<arbitrary>], iteration_bounds = array<i64: 1, 2>, scalar_prefetch = 0 : i64, scratch_operands = 0 : i64, tpu.core_type = #tpu.core_type<tc>, window_params = [{transform_indices = @transform_0, window_bounds = array<i64: 16, 8, 128>}, {transform_indices = @transform_1, window_bounds = array<i64: 8, 16>}]} {
    %c0 = arith.constant 0 : index
    %c0_0 = arith.constant 0 : index
    %c0_1 = arith.constant 0 : index
    %0 = vector.load %arg2[%c0, %c0_0, %c0_1] : memref<16x8x128xf32, #tpu.memory_space<vmem>>, vector<16x8x128xf32>
    %cst = arith.constant dense<0xFF800000> : vector<16x8xf32>
    %1 = vector.multi_reduction <maximumf>, %0, %cst [2] : vector<16x8x128xf32> to vector<16x8xf32>
    %2 = tpu.transpose %1, [1, 0] : vector<16x8xf32> -> vector<8x16xf32>
    %c0_i32 = arith.constant 0 : i32
    %3 = arith.cmpi eq, %arg1, %c0_i32 : i32
    %4 = arith.extui %3 : i1 to i32
    %c0_i32_2 = arith.constant 0 : i32
    %5 = arith.cmpi ne, %4, %c0_i32_2 : i32
    scf.if %5 {
      %c0_5 = arith.constant 0 : index
      %c0_6 = arith.constant 0 : index
      %9 = vector.load %arg3[%c0_5, %c0_6] : memref<8x16xf32, #tpu.memory_space<vmem>>, vector<8x16xf32>
      tpu.vector_store %arg3[%c0_5, %c0_6], %2 {strides = array<i32>} : memref<8x16xf32, #tpu.memory_space<vmem>>, vector<8x16xf32>,
    } else {
    }
    %c0_i32_3 = arith.constant 0 : i32
    %6 = arith.cmpi sgt, %arg1, %c0_i32_3 : i32
    %7 = arith.extui %6 : i1 to i32
    %c0_i32_4 = arith.constant 0 : i32
    %8 = arith.cmpi ne, %7, %c0_i32_4 : i32
    scf.if %8 {
      %c0_5 = arith.constant 0 : index
      %c0_6 = arith.constant 0 : index
      %9 = vector.load %arg3[%c0_5, %c0_6] : memref<8x16xf32, #tpu.memory_space<vmem>>, vector<8x16xf32>
      %10 = arith.maximumf %9, %2 : vector<8x16xf32>
      %c0_7 = arith.constant 0 : index
      %c0_8 = arith.constant 0 : index
      %11 = vector.load %arg3[%c0_7, %c0_8] : memref<8x16xf32, #tpu.memory_space<vmem>>, vector<8x16xf32>
      tpu.vector_store %arg3[%c0_7, %c0_8], %10 {strides = array<i32>} : memref<8x16xf32, #tpu.memory_space<vmem>>, vector<8x16xf32>,
    } else {
    }
    return
  }
  func.func @transform_0(%arg0: i32, %arg1: i32) -> (i32, i32, i32) {
    %c0_i32 = arith.constant 0 : i32
    %c0_i32_0 = arith.constant 0 : i32
    return %arg0, %c0_i32, %arg1 : i32, i32, i32
  }
  func.func @transform_1(%arg0: i32, %arg1: i32) -> (i32, i32) {
    %c0_i32 = arith.constant 0 : i32
    %c0_i32_0 = arith.constant 0 : i32
    return %c0_i32, %arg0 : i32, i32
  }
}

</mosaic_0001>

<llo_original>
// kernel: tpu_custom_call.1
$region0: #{tpu_custom_call.1}
  #allocation0 [shape = 'u32[]', space=smem, size = 0x4, offset = 0x4, fixed_abs, tag = 'smem constant byte address 0x4 - core index']
  #allocation1 [shape = 'u32[72,128]{1,0:T(1,128)}', space=vmem, size = 0x9000, scoped, tag = 'internal scratch']
  %s0 = inlined_call_operand.hbm [shape: f32[16,8,256], index: 0, kind: input, shape index: {}]
  %s1 = inlined_call_operand.hbm [shape: f32[8,16], index: 1, kind: output, shape index: {}]
  %s2 = sld [smem:[#allocation0]]
  $region49: #{tpu_custom_call.1} parent=0
    _
  %s4 = ssub.s32 1, %s2
  %s5 = scalar_select 0, %s4, %s2
  $region1: #{tpu_custom_call.1} parent=0
    #allocation2 [shape = 'u8[131072]{0}', space=vmem, size = 0x20000, scoped, tag = 'input window, operand 0']
    #allocation3 [shape = 's32[2]{0}', space=sflag, size = 0x8, scoped, tag = 'scoped memory for tpu_custom_call.1']
    #allocation4 [shape = 's32[2]{0}', space=sflag, size = 0x8, scoped, tag = 'scoped memory for tpu_custom_call.1']
    #allocation5 [shape = 'u8[4096]{0}', space=vmem, size = 0x1000, scoped, tag = 'output window, operand 0, single buffered']
    %6 = vsyncpa [#allocation3], 0
    %s7 = scalar_lea.sflag [#allocation3], 1
    %8 = vsyncpa %s7, 0
    %9 = vsyncpa [#allocation4], 0
    loop: start=0, step=1, limit=4
    $region2: #{tpu_custom_call.1} parent=1 // loop_pre_header
      _
    $region3: #{tpu_custom_call.1} parent=1 // loop_header
      %s11 = sphi 0, %s15
      %p12 = scmp.ge.s32.totalorder %s11, 4
      %s18 = sphi 0, %s30
      %s19 = sphi 0, %s26
      %s20 = sphi 0, %s18
      %s21 = sphi 0, %s19
      %s22 = sphi 0, %s20
      %s23 = sphi 0, %s21
      %s35 = sphi 0, %s37
      %s38 = sphi 0, %s35
      %s39 = sphi 0, %s38
      %s55 = sphi 0, %s39
      %s61 = sphi 0, %s63
      %s64 = sphi 0, %s61
      %s65 = sphi 0, %s64
      %s81 = sphi 0, %s65
    $region4: #{tpu_custom_call.1} parent=1 // loop_header_branch
      %14 = sbr.rel (%p12) target = $region8
    $region5: #{tpu_custom_call.1} parent=1 // loop_body
      %s16 = ssub.s32 %s11, 1
      %s17 = ssub.s32 %s11, 2
      %s24 = sadd.s32 1, %s19
      %p25 = scmp.ge.s32.totalorder %s24, 2
      %s26 = scalar_select %p25, 0, %s24
      %s27 = sadd.s32 1, %s18
      %s28 = scalar_select %p25, %s27, %s18
      %p29 = scmp.ge.s32.totalorder %s28, 1
      %s30 = scalar_select %p29, 0, %s28
      %s31 = ssub.s32 %s18, %s30
      %s32 = ssub.s32 %s19, %s26
      %s33 = sor.u32 %s31, %s32
      %p34 = scmp.eq.s32.totalorder %s33, 0
      %s36 = sadd.s32 %s35, 1
      %s37 = scalar_select %p34, %s35, %s36
      %p40 = pneg %p34
      %p41 = scmp.eq.s32.totalorder %s11, 1
      %p42 = por %p40, %p41
      %p43 = scmp.ne.s32.totalorder %s35, %s38
      %p44 = scmp.eq.s32.totalorder %s11, 0
      %p45 = por %p43, %p44
      %p46 = scmp.ne.s32.totalorder %s35, %s38
      %p47 = scmp.eq.s32.totalorder %s16, 1
      %p48 = por %p46, %p47
      %p49 = scmp.ne.s32.totalorder %s38, %s39
      %p50 = scmp.eq.s32.totalorder %s16, 0
      %p51 = por %p49, %p50
      %p52 = scmp.ne.s32.totalorder %s38, %s39
      %p53 = scmp.eq.s32.totalorder %s17, 1
      %p54 = por %p52, %p53
      %p56 = scmp.ne.s32.totalorder %s39, %s55
      %p57 = scmp.eq.s32.totalorder %s17, 0
      %p58 = por %p56, %p57
      %s59 = ssub.s32 %s18, %s30
      %p60 = scmp.eq.s32.totalorder %s59, 0
      %s62 = sadd.s32 %s61, 1
      %s63 = scalar_select %p60, %s61, %s62
      %p66 = pneg %p60
      %p67 = scmp.eq.s32.totalorder %s11, 1
      %p68 = por %p66, %p67
      %p69 = scmp.ne.s32.totalorder %s61, %s64
      %p70 = scmp.eq.s32.totalorder %s11, 0
      %p71 = por %p69, %p70
      %p72 = scmp.ne.s32.totalorder %s61, %s64
      %p73 = scmp.eq.s32.totalorder %s16, 1
      %p74 = por %p72, %p73
      %p75 = scmp.ne.s32.totalorder %s64, %s65
      %p76 = scmp.eq.s32.totalorder %s16, 0
      %p77 = por %p75, %p76
      %p78 = scmp.ne.s32.totalorder %s64, %s65
      %p79 = scmp.eq.s32.totalorder %s17, 1
      %p80 = por %p78, %p79
      %p82 = scmp.ne.s32.totalorder %s65, %s81
      %p83 = scmp.eq.s32.totalorder %s17, 0
      %p84 = por %p82, %p83
      %p85 = scmp.le.s32.totalorder 1, %s11
      %p86 = scmp.lt.s32.totalorder %s11, 3
      %p87 = pnand %p85, %p86
      %p88 = pneg %p87
      // Predicated region
      $region9: #{tpu_custom_call.1} parent=5 // pred_check
        _
      $region10: #{tpu_custom_call.1} parent=5 // pred_check_branch
        %90 = sbr.rel (%p87) target = $region12
      $region11: #{tpu_custom_call.1} parent=5 // pred_region
        %s91 = ssub.s32 %s11, 1
      $region12: #{tpu_custom_call.1} parent=5 // pred_fallthru
        _
      %p92 = scmp.lt.s32.totalorder %s11, 2
      // Predicated region
      $region13: #{tpu_custom_call.1} parent=5 // pred_check
        %p93 = pneg %p92
      $region14: #{tpu_custom_call.1} parent=5 // pred_check_branch
        %95 = sbr.rel (%p93) target = $region16
      $region15: #{tpu_custom_call.1} parent=5 // pred_region
        // Predicated region
        $region17: #{tpu_custom_call.1} parent=15 // pred_check
          %p96 = pneg %p45
        $region18: #{tpu_custom_call.1} parent=15 // pred_check_branch
          %98 = sbr.rel (%p96) target = $region20
        $region19: #{tpu_custom_call.1} parent=15 // pred_region
          %s99 = sand.u32 %s35, 1
          %s100 = scalar_lea.sflag [#allocation3], %s99
          %s101 = sand.u32 %s35, 1
          %s102 = smul.addr %s101, 128
          %s103 = scalar_lea.vmem [#allocation2], %s102
          %s104 = smul.u32 16, %s18
          %106 = vsyncadd %s100, 0
          %s107 = smul.addr %s104, 2
          %s108 = sadd.s32 %s19, %s107
          %s109 = smul.addr %s108, 8
          %s110 = scalar_lea.hbm %s0, %s109
          %s111 = sshll.u32 %s110, 4
          %s112 = int_to_ptr.hbm [resolvable:$true] %s111
          %s113 = sshll.u32 %s103, 4
          %s114 = int_to_ptr.vmem [resolvable:$true] %s113
          %119 = dma.hbm_to_vmem [thread:$0]  %s112, 2048, %s114, %s100, 256, 128, 8
        $region20: #{tpu_custom_call.1} parent=15 // pred_fallthru
          _
      $region16: #{tpu_custom_call.1} parent=5 // pred_fallthru
        _
      %p120 = scmp.le.s32.totalorder 1, %s11
      %p121 = scmp.lt.s32.totalorder %s11, 3
      %p122 = pnand %p120, %p121
      %p123 = pneg %p122
      // Predicated region
      $region21: #{tpu_custom_call.1} parent=5 // pred_check
        _
      $region22: #{tpu_custom_call.1} parent=5 // pred_check_branch
        %125 = sbr.rel (%p122) target = $region24
      $region23: #{tpu_custom_call.1} parent=5 // pred_region
        %s126 = ssub.s32 %s11, 1
        %s127 = sand.u32 %s38, 1
        %s128 = scalar_lea.sflag [#allocation3], %s127
        %s129 = sand.u32 %s38, 1
        %s130 = smul.addr %s129, 128
        %s131 = scalar_lea.vmem [#allocation2], %s130
        // Predicated region
        $region25: #{tpu_custom_call.1} parent=23 // pred_check
          %p132 = pneg %p51
        $region26: #{tpu_custom_call.1} parent=23 // pred_check_branch
          %134 = sbr.rel (%p132) target = $region28
        $region27: #{tpu_custom_call.1} parent=23 // pred_region
          %136 = dma.done %s128, 2048
        $region28: #{tpu_custom_call.1} parent=23 // pred_fallthru
          _
        %s137 = sand.u32 %s38, 1
        %s138 = scalar_lea.sflag [#allocation3], %s137
        %s139 = sand.u32 %s38, 1
        %s140 = smul.addr %s139, 128
        %s141 = scalar_lea.vmem [#allocation2], %s140
        %p142 = pneg %p51
        %p143 = pneg %p48
        %p144 = pneg %p77
        %p145 = pneg %p74
        %s146 = smul.u32 16, %s20
        %v147 = vld [vmem:[%s131] sm:$0xff]
        %v148 = vld [vmem:[%s131 + $0x8] sm:$0xff]
        %v149 = vld [vmem:[%s131 + $0x10] sm:$0xff]
        %v150 = vld [vmem:[%s131 + $0x18] sm:$0xff]
        %v151 = vld [vmem:[%s131 + $0x20] sm:$0xff]
        %v152 = vld [vmem:[%s131 + $0x28] sm:$0xff]
        %v153 = vld [vmem:[%s131 + $0x30] sm:$0xff]
        %v154 = vld [vmem:[%s131 + $0x38] sm:$0xff]
        %v155 = vld [vmem:[%s131 + $0x40] sm:$0xff]
        %v156 = vld [vmem:[%s131 + $0x48] sm:$0xff]
        %v157 = vld [vmem:[%s131 + $0x50] sm:$0xff]
        %v158 = vld [vmem:[%s131 + $0x58] sm:$0xff]
        %v159 = vld [vmem:[%s131 + $0x60] sm:$0xff]
        %v160 = vld [vmem:[%s131 + $0x68] sm:$0xff]
        %v161 = vld [vmem:[%s131 + $0x70] sm:$0xff]
        %v162 = vld [vmem:[%s131 + $0x78] sm:$0xff]
        %163 = vmax.xlane.f32.xlu0 %v147
        %v164 = vpop.xlane.xlu0 %163
        %165 = vmax.xlane.f32.xlu0 %v148
        %v166 = vpop.xlane.xlu0 %165
        %167 = vmax.xlane.f32.xlu0 %v149
        %v168 = vpop.xlane.xlu0 %167
        %169 = vmax.xlane.f32.xlu0 %v150
        %v170 = vpop.xlane.xlu0 %169
        %171 = vmax.xlane.f32.xlu0 %v151
        %v172 = vpop.xlane.xlu0 %171
        %173 = vmax.xlane.f32.xlu0 %v152
        %v174 = vpop.xlane.xlu0 %173
        %175 = vmax.xlane.f32.xlu0 %v153
        %v176 = vpop.xlane.xlu0 %175
        %177 = vmax.xlane.f32.xlu0 %v154
        %v178 = vpop.xlane.xlu0 %177
        %179 = vmax.xlane.f32.xlu0 %v155
        %v180 = vpop.xlane.xlu0 %179
        %181 = vmax.xlane.f32.xlu0 %v156
        %v182 = vpop.xlane.xlu0 %181
        %183 = vmax.xlane.f32.xlu0 %v157
        %v184 = vpop.xlane.xlu0 %183
        %185 = vmax.xlane.f32.xlu0 %v158
        %v186 = vpop.xlane.xlu0 %185
        %187 = vmax.xlane.f32.xlu0 %v159
        %v188 = vpop.xlane.xlu0 %187
        %189 = vmax.xlane.f32.xlu0 %v160
        %v190 = vpop.xlane.xlu0 %189
        %191 = vmax.xlane.f32.xlu0 %v161
        %v192 = vpop.xlane.xlu0 %191
        %193 = vmax.xlane.f32.xlu0 %v162
        %v194 = vpop.xlane.xlu0 %193
        %v211 = vlaneseq
        %v212 = vand.u32 %v211, 127
        %v213 = vperm.slane %v164, %v212
        %v214 = vperm.slane %v166, %v212
        %v215 = vperm.slane %v168, %v212
        %v216 = vperm.slane %v170, %v212
        %v217 = vperm.slane %v172, %v212
        %v218 = vperm.slane %v174, %v212
        %v219 = vperm.slane %v176, %v212
        %v220 = vperm.slane %v178, %v212
        %v221 = vperm.slane %v180, %v212
        %v222 = vperm.slane %v182, %v212
        %v223 = vperm.slane %v184, %v212
        %v224 = vperm.slane %v186, %v212
        %v225 = vperm.slane %v188, %v212
        %v226 = vperm.slane %v190, %v212
        %v227 = vperm.slane %v192, %v212
        %v228 = vperm.slane %v194, %v212
        %vm229 = vcmask 1041409
        %v230 = vsel %vm229, %v214, %v213
        %vm231 = vcmask 1042434
        %v232 = vsel %vm231, %v215, %v230
        %vm233 = vcmask 1043459
        %v234 = vsel %vm233, %v216, %v232
        %vm235 = vcmask 1044484
        %v236 = vsel %vm235, %v217, %v234
        %vm237 = vcmask 1045509
        %v238 = vsel %vm237, %v218, %v236
        %vm239 = vcmask 1046534
        %v240 = vsel %vm239, %v219, %v238
        %vm241 = vcmask 1047559
        %v242 = vsel %vm241, %v220, %v240
        %v243 = vsel %vm229, %v222, %v221
        %v244 = vsel %vm231, %v223, %v243
        %v245 = vsel %vm233, %v224, %v244
        %v246 = vsel %vm235, %v225, %v245
        %v247 = vsel %vm237, %v226, %v246
        %v248 = vsel %vm239, %v227, %v247
        %v249 = vsel %vm241, %v228, %v248
        %252 = vxpose.xlu0.b32.start [1/16] %v242, 128
        %253 = vxpose.xlu0.b32.cont [2/16] %v249, 128
        %254 = vxpose.xlu0.b32.cont [3/16] 0.0, 128
        %255 = vxpose.xlu0.b32.cont [4/16] 0.0, 128
        %256 = vxpose.xlu0.b32.cont [5/16] 0.0, 128
        %257 = vxpose.xlu0.b32.cont [6/16] 0.0, 128
        %258 = vxpose.xlu0.b32.cont [7/16] 0.0, 128
        %259 = vxpose.xlu0.b32.cont [8/16] 0.0, 128
        %260 = vxpose.xlu0.b32.cont [9/16] 0.0, 128
        %261 = vxpose.xlu0.b32.cont [10/16] 0.0, 128
        %262 = vxpose.xlu0.b32.cont [11/16] 0.0, 128
        %263 = vxpose.xlu0.b32.cont [12/16] 0.0, 128
        %264 = vxpose.xlu0.b32.cont [13/16] 0.0, 128
        %265 = vxpose.xlu0.b32.cont [14/16] 0.0, 128
        %266 = vxpose.xlu0.b32.cont [15/16] 0.0, 128
        %267 = vxpose.xlu0.b32.end [16/16] 0.0, 128
        %v268 = vpop.trf.xlu0
        %v269 = vpop.trf.xlu0
        %v270 = vpop.trf.xlu0
        %v271 = vpop.trf.xlu0
        %v272 = vpop.trf.xlu0
        %v273 = vpop.trf.xlu0
        %v274 = vpop.trf.xlu0
        %v275 = vpop.trf.xlu0
        %v276 = vpop.trf.xlu0
        %v277 = vpop.trf.xlu0
        %v278 = vpop.trf.xlu0
        %v279 = vpop.trf.xlu0
        %v280 = vpop.trf.xlu0
        %v281 = vpop.trf.xlu0
        %v282 = vpop.trf.xlu0
        %v283 = vpop.trf.xlu0
        %p284 = scmp.eq.s32.totalorder %s21, 0
        // Predicated region
        $region29: #{tpu_custom_call.1} parent=23 // pred_check
          %p285 = pneg %p284
        $region30: #{tpu_custom_call.1} parent=23 // pred_check_branch
          %287 = sbr.rel (%p285) target = $region32
        $region31: #{tpu_custom_call.1} parent=23 // pred_region
          %vm288 = vcmask 130048
          %289 = vst.msk [vmem:[#allocation5] sm:$0xff] %vm288, %v268
        $region32: #{tpu_custom_call.1} parent=23 // pred_fallthru
          _
        %p290 = scmp.gt.s32.totalorder %s21, 0
        // Predicated region
        $region33: #{tpu_custom_call.1} parent=23 // pred_check
          %p291 = pneg %p290
        $region34: #{tpu_custom_call.1} parent=23 // pred_check_branch
          %293 = sbr.rel (%p291) target = $region36
        $region35: #{tpu_custom_call.1} parent=23 // pred_region
          %v294 = vld [vmem:[#allocation5] sm:$0xff]
          %v295 = vmax.f32 %v294, %v268
          %vm296 = vcmask 130048
          %297 = vst.msk [vmem:[#allocation5] sm:$0xff] %vm296, %v295
        $region36: #{tpu_custom_call.1} parent=23 // pred_fallthru
          _
        // Predicated region
        $region37: #{tpu_custom_call.1} parent=23 // pred_check
          %p298 = pneg %p74
        $region38: #{tpu_custom_call.1} parent=23 // pred_check_branch
          %300 = sbr.rel (%p298) target = $region40
        $region39: #{tpu_custom_call.1} parent=23 // pred_region
          %302 = vsyncadd [#allocation4], 0
          %s303 = smul.addr %s20, 8
          %s304 = scalar_lea.hbm %s1, %s303
          %s306 = sshll.u32 [#allocation5], 4
          %s307 = int_to_ptr.vmem [resolvable:$true] %s306
          %s308 = sshll.u32 %s304, 4
          %s309 = int_to_ptr.hbm [resolvable:$true] %s308
          %311 = dma.vmem_to_hbm [thread:$0]  %s307, 128, %s309, [#allocation4]
        $region40: #{tpu_custom_call.1} parent=23 // pred_fallthru
          _
        // Predicated region
        $region41: #{tpu_custom_call.1} parent=23 // pred_check
          %p312 = pneg %p74
        $region42: #{tpu_custom_call.1} parent=23 // pred_check_branch
          %314 = sbr.rel (%p312) target = $region44
        $region43: #{tpu_custom_call.1} parent=23 // pred_region
          %316 = dma.done [#allocation4], 128
        $region44: #{tpu_custom_call.1} parent=23 // pred_fallthru
          _
      $region24: #{tpu_custom_call.1} parent=5 // pred_fallthru
        _
      %p317 = scmp.le.s32.totalorder 2, %s11
      // Predicated region
      $region45: #{tpu_custom_call.1} parent=5 // pred_check
        %p318 = pneg %p317
      $region46: #{tpu_custom_call.1} parent=5 // pred_check_branch
        %320 = sbr.rel (%p318) target = $region48
      $region47: #{tpu_custom_call.1} parent=5 // pred_region
        %s321 = ssub.s32 %s11, 2
      $region48: #{tpu_custom_call.1} parent=5 // pred_fallthru
        _
    $region6: #{tpu_custom_call.1} parent=1 // loop_footer
      %s15 = sadd.s32 1, %s11
    $region7: #{tpu_custom_call.1} parent=1 // loop_footer_branch
      %10 = sbr.rel target = $region3
    $region8: #{tpu_custom_call.1} parent=1 // loop_exit
      _
    %322 = vsyncpa [#allocation3], 1
    %s323 = scalar_lea.sflag [#allocation3], 1
    %324 = vsyncpa %s323, 1
    %325 = vsyncpa [#allocation4], 1
    %s326 = scalar_lea.sflag [#allocation4], 1
    %327 = vsyncpa %s326, 1

</llo_original>
